<compile_context>
chip_gen: v5e
topology: v5e:2x2
jax: 0.10.0
libtpu: 0.0.40
codegen_flags: <defaults>
</compile_context>

<pallas_src>
import functools
import math

import jax
import jax.numpy as jnp
from jax import lax
from jax.experimental import pallas as pl
from jax.experimental.pallas import tpu as pltpu


def _cdiv(a: int, b: int) -> int:
    return -(-a // b)


def _round_up(a: int, b: int) -> int:
    return _cdiv(a, b) * b


def _l1_penalty_kernel(x_ref, ref_ref, out_ref, *, dim, k, split_f32):
    # x_ref:   (tile_p, k*dim)  packed row tile (k original rows per packed row)
    # ref_ref: (1, k*dim)       init_point tiled k times (broadcast over rows)
    # out_ref: (tile_p, k)      out[p, j] = L1 penalty of original row p*k + j (f32)
    diff = jnp.abs(x_ref[...] - ref_ref[...])            # VPU, stays in input dtype

    if k == 1:
        # Unpacked path (dim >= 128): exact f32 lane reduction, no skinny matvec.
        out_ref[...] = jnp.sum(diff.astype(jnp.float32), axis=-1, keepdims=True)
        return

    lane = k * dim
    # Block-diagonal 0/1 segment matrix built in-kernel from iotas:
    # seg[c, j] = 1 iff lane c belongs to packed segment j (i.e. j*dim <= c < (j+1)*dim).
    c = lax.broadcasted_iota(jnp.int32, (lane, k), 0)
    j = lax.broadcasted_iota(jnp.int32, (lane, k), 1)
    t = c - j * dim
    seg = jnp.where(jnp.logical_and(t >= 0, t < dim), 1.0, 0.0).astype(jnp.bfloat16)

    def _dot(lhs_bf16):
        # (tile_p, lane) @ (lane, k) -> (tile_p, k); f32 MXU accumulation.
        return lax.dot_general(
            lhs_bf16,
            seg,
            dimension_numbers=(((1,), (0,)), ((), ())),
            preferred_element_type=jnp.float32,
        )

    if split_f32:
        # f32 inputs: two DEFAULT-precision bf16 passes (hi + residual) keep
        # ~f32 accuracy of the sum without HIGHEST's 6-pass MXU emulation.
        hi = diff.astype(jnp.bfloat16)
        lo = (diff - hi.astype(jnp.float32)).astype(jnp.bfloat16)
        out_ref[...] = _dot(hi) + _dot(lo)
    else:
        # bf16 fast path: native bf16 operands, single MXU pass.
        out_ref[...] = _dot(diff.astype(jnp.bfloat16))


def l1_penalty_objective(X: jax.Array, init_point: jax.Array) -> jax.Array:
    """Pallas equivalent of L1PenaltyObjective.forward.

    Args:
        X:          (*batch_shape, q, dim)
        init_point: (1, dim)

    Returns:
        (1, *batch_shape, q) tensor of L1 penalties (same dtype as X).
    """
    *batch_shape, q, dim = X.shape
    rows = math.prod(batch_shape) * q if batch_shape else q

    # Kernel compute dtype: bf16 stays bf16 (fast path), everything else -> f32.
    kdtype = jnp.bfloat16 if X.dtype == jnp.bfloat16 else jnp.float32
    itemsize = jnp.dtype(kdtype).itemsize

    # Lane packing for small dim.
    k = max(1, 128 // dim) if dim < 128 else 1
    lane = k * dim
    packed_rows = _cdiv(rows, k)

    # ---- generation-aware tile / VMEM budgeting ---------------------------
    try:
        vmem_cap = pltpu.get_tpu_info().vmem_capacity_bytes
    except Exception:  # interpret mode / unknown chip: assume smallest (v7x)
        vmem_cap = 64 * 1024 * 1024
    if vmem_cap <= 80 * 1024 * 1024:          # v7x: 64 MiB VMEM per TensorCore
        target_tile_bytes = 5 * 1024 * 1024
        vmem_limit = 44 * 1024 * 1024
    else:                                      # v5e / v6e: 128 MiB VMEM
        target_tile_bytes = 10 * 1024 * 1024
        vmem_limit = 80 * 1024 * 1024

    tile_p = max(8, target_tile_bytes // (lane * itemsize))
    if tile_p >= 128:
        tile_p = (tile_p // 128) * 128
    else:
        tile_p = (tile_p // 8) * 8
    # Keep at least 2 row tiles when there is enough work (v7x megacore +
    # pipeline overlap); also avoid one huge block for small problems.
    tile_p = min(tile_p, max(128, _round_up(_cdiv(packed_rows, 2), 128)))
    num_tiles = _cdiv(packed_rows, tile_p)
    # TODO(synk): for extremely large dim (lane*tile_p bytes >> VMEM budget even
    # at tile_p=8), add a second "arbitrary" grid axis over dim with an f32
    # accumulator scratch instead of a single huge lane block.

    # ---- data prep (no whole-array pad) ------------------------------------
    x2d = X.reshape(rows, dim).astype(kdtype)
    pad = (-rows) % k
    if pad:  # <= k-1 rows, only when dim < 128 and rows isn't a multiple of k
        x2d = jnp.pad(x2d, ((0, pad), (0, 0)))
    x_packed = x2d.reshape(packed_rows, lane)          # free reshape (row-major)

    ref_packed = jnp.tile(init_point.reshape(1, dim).astype(kdtype), (1, k))

    kernel = functools.partial(
        _l1_penalty_kernel, dim=dim, k=k, split_f32=(kdtype == jnp.float32)
    )

    out = pl.pallas_call(
        kernel,
        out_shape=jax.ShapeDtypeStruct((packed_rows, k), jnp.float32),
        grid=(num_tiles,),
        in_specs=[
            pl.BlockSpec((tile_p, lane), lambda i: (i, 0)),   # streamed row tiles
            pl.BlockSpec((1, lane), lambda i: (0, 0)),        # resident reference row
        ],
        out_specs=pl.BlockSpec((tile_p, k), lambda i: (i, 0)),
        compiler_params=pltpu.CompilerParams(
            dimension_semantics=("parallel",),                # megacore-shardable
            vmem_limit_bytes=vmem_limit,
        ),
        cost_estimate=pl.CostEstimate(
            flops=2 * packed_rows * lane * (k + 1),
            transcendentals=0,
            bytes_accessed=packed_rows * lane * itemsize
            + packed_rows * k * 4
            + lane * itemsize,
        ),
    )(x_packed, ref_packed)

    # out[p, j] is the L1 penalty of original row p*k + j.
    flat = out.reshape(packed_rows * k)[:rows]
    return flat.reshape((1, *batch_shape, q)).astype(X.dtype)


if __name__ == "__main__":
    key = jax.random.PRNGKey(0)
    kx, kp = jax.random.split(key)

    # 1) Small shapes consistent with the module: batch_shape=(2,), q=8, dim=32.
    batch, q, dim = 2, 8, 32
    X = jax.random.normal(kx, (batch, q, dim), dtype=jnp.float32)
    init_point = jax.random.normal(kp, (1, dim), dtype=jnp.float32)

    out = jax.block_until_ready(l1_penalty_objective(X, init_point))
    ref = jnp.sum(jnp.abs(X - init_point), axis=-1)[None]
    assert out.shape == (1, batch, q), out.shape
    assert jnp.allclose(out, ref, atol=1e-3, rtol=1e-3), float(
        jnp.max(jnp.abs(out - ref))
    )

    # 2) No batch dim, dim >= 128 (unpacked, exact f32 reduction), ragged rows.
    X2 = jax.random.normal(kx, (5, 160), dtype=jnp.float32)
    ip2 = jax.random.normal(kp, (1, 160), dtype=jnp.float32)
    out2 = jax.block_until_ready(l1_penalty_objective(X2, ip2))
    ref2 = jnp.sum(jnp.abs(X2 - ip2), axis=-1)[None]
    assert out2.shape == (1, 5), out2.shape
    assert jnp.allclose(out2, ref2, atol=1e-3, rtol=1e-3), float(
        jnp.max(jnp.abs(out2 - ref2))
    )

    # 3) bf16 fast path (single-pass bf16 MXU operands, f32 accumulation).
    X3 = jax.random.normal(kx, (3, 7, 32), dtype=jnp.bfloat16)
    ip3 = jax.random.normal(kp, (1, 32), dtype=jnp.bfloat16)
    out3 = jax.block_until_ready(l1_penalty_objective(X3, ip3))
    ref3 = jnp.sum(
        jnp.abs(X3.astype(jnp.float32) - ip3.astype(jnp.float32)), axis=-1
    )[None]
    assert out3.shape == (1, 3, 7), out3.shape
    assert out3.dtype == jnp.bfloat16, out3.dtype
    assert jnp.allclose(out3.astype(jnp.float32), ref3, atol=2e-2, rtol=2e-2), float(
        jnp.max(jnp.abs(out3.astype(jnp.float32) - ref3))
    )

    print("KERNEL_OK")
</pallas_src>

<mosaic_0001>
module attributes {stable_mosaic.version = 11 : i64} {
  func.func @_l1_penalty_kernel(%arg0: i32, %arg1: memref<128x128xf32, #tpu.memory_space<vmem>>, %arg2: memref<1x128xf32, #tpu.memory_space<vmem>>, %arg3: memref<128x4xf32, #tpu.memory_space<vmem>>) attributes {dimension_semantics = [#tpu.dimension_semantics<parallel>], iteration_bounds = array<i64: 1>, scalar_prefetch = 0 : i64, scratch_operands = 0 : i64, tpu.core_type = #tpu.core_type<tc>, window_params = [{transform_indices = @transform_0, window_bounds = array<i64: 128, 128>}, {pipeline_mode = #tpu.pipeline_mode<synchronous>, transform_indices = @transform_1, window_bounds = array<i64: 1, 128>}, {transform_indices = @transform_2, window_bounds = array<i64: 128, 4>}]} {
    %c0 = arith.constant 0 : index
    %c0_0 = arith.constant 0 : index
    %0 = vector.load %arg1[%c0, %c0_0] : memref<128x128xf32, #tpu.memory_space<vmem>>, vector<128x128xf32>
    %c0_1 = arith.constant 0 : index
    %c0_2 = arith.constant 0 : index
    %1 = vector.load %arg2[%c0_1, %c0_2] : memref<1x128xf32, #tpu.memory_space<vmem>>, vector<1x128xf32>
    %2 = vector.broadcast %1 : vector<1x128xf32> to vector<128x128xf32>
    %3 = arith.subf %0, %2 : vector<128x128xf32>
    %4 = math.absf %3 : vector<128x128xf32>
    %5 = tpu.iota {dimensions = array<i32: 0>} : vector<128x4xi32>
    %6 = tpu.iota {dimensions = array<i32: 1>} : vector<128x4xi32>
    %c32_i32 = arith.constant 32 : i32
    %7 = vector.broadcast %c32_i32 : i32 to vector<128x4xi32>
    %8 = arith.muli %6, %7 : vector<128x4xi32>
    %9 = arith.subi %5, %8 : vector<128x4xi32>
    %c0_i32 = arith.constant 0 : i32
    %10 = vector.broadcast %c0_i32 : i32 to vector<128x4xi32>
    %11 = arith.cmpi sge, %9, %10 : vector<128x4xi32>
    %c32_i32_3 = arith.constant 32 : i32
    %12 = vector.broadcast %c32_i32_3 : i32 to vector<128x4xi32>
    %13 = arith.cmpi slt, %9, %12 : vector<128x4xi32>
    %14 = arith.andi %11, %13 : vector<128x4xi1>
    %cst = arith.constant 1.000000e+00 : f32
    %cst_4 = arith.constant 0.000000e+00 : f32
    %15 = vector.broadcast %cst : f32 to vector<128x4xf32>
    %16 = vector.broadcast %cst_4 : f32 to vector<128x4xf32>
    %17 = arith.select %14, %15, %16 : vector<128x4xi1>, vector<128x4xf32>
    %18 = arith.truncf %17 : vector<128x4xf32> to vector<128x4xbf16>
    %19 = arith.truncf %4 : vector<128x128xf32> to vector<128x128xbf16>
    %20 = arith.extf %19 : vector<128x128xbf16> to vector<128x128xf32>
    %21 = arith.subf %4, %20 : vector<128x128xf32>
    %22 = arith.truncf %21 : vector<128x128xf32> to vector<128x128xbf16>
    %cst_5 = arith.constant dense<0.000000e+00> : vector<128x4xf32>
    %23 = tpu.matmul %19, %18, %cst_5 {dimension_numbers = #tpu.dot_dimension_numbers<[1], [0], [0], [1], [0, 0, 1, 1], [], []>} : vector<128x128xbf16>, vector<128x4xbf16>, vector<128x4xf32> -> vector<128x4xf32>
    %cst_6 = arith.constant dense<0.000000e+00> : vector<128x4xf32>
    %24 = tpu.matmul %22, %18, %cst_6 {dimension_numbers = #tpu.dot_dimension_numbers<[1], [0], [0], [1], [0, 0, 1, 1], [], []>} : vector<128x128xbf16>, vector<128x4xbf16>, vector<128x4xf32> -> vector<128x4xf32>
    %25 = arith.addf %23, %24 : vector<128x4xf32>
    %c0_7 = arith.constant 0 : index
    %c0_8 = arith.constant 0 : index
    %26 = vector.load %arg3[%c0_7, %c0_8] : memref<128x4xf32, #tpu.memory_space<vmem>>, vector<128x4xf32>
    tpu.vector_store %arg3[%c0_7, %c0_8], %25 {strides = array<i32>} : memref<128x4xf32, #tpu.memory_space<vmem>>, vector<128x4xf32>,
    return
  }
  func.func @transform_0(%arg0: i32) -> (i32, i32) {
    %c0_i32 = arith.constant 0 : i32
    %c0_i32_0 = arith.constant 0 : i32
    return %arg0, %c0_i32 : i32, i32
  }
  func.func @transform_1(%arg0: i32) -> (i32, i32) {
    %c0_i32 = arith.constant 0 : i32
    %c0_i32_0 = arith.constant 0 : i32
    %c0_i32_1 = arith.constant 0 : i32
    return %c0_i32, %c0_i32_0 : i32, i32
  }
  func.func @transform_2(%arg0: i32) -> (i32, i32) {
    %c0_i32 = arith.constant 0 : i32
    %c0_i32_0 = arith.constant 0 : i32
    return %arg0, %c0_i32 : i32, i32
  }
}

</mosaic_0001>

<llo_original>
// kernel: tpu_custom_call.1
$region0: #{tpu_custom_call.1}
  #allocation0 [shape = 'u32[]', space=smem, size = 0x4, offset = 0x4, fixed_abs, tag = 'smem constant byte address 0x4 - core index']
  #allocation1 [shape = 'u32[72,128]{1,0:T(1,128)}', space=vmem, size = 0x9000, scoped, tag = 'internal scratch']
  %s0 = inlined_call_operand.hbm [shape: f32[4,128], index: 0, kind: input, shape index: {}]
  %s1 = inlined_call_operand.hbm [shape: f32[1,128], index: 1, kind: input, shape index: {}]
  %s2 = inlined_call_operand.hbm [shape: f32[4,4], index: 2, kind: output, shape index: {}]
  %s3 = sld [smem:[#allocation0]]
  $region26: #{tpu_custom_call.1} parent=0
    _
  %s5 = ssub.s32 1, %s3
  %s6 = scalar_select 0, %s5, %s3
  $region1: #{tpu_custom_call.1} parent=0
    #allocation2 [shape = 'u8[65536]{0}', space=vmem, size = 0x10000, scoped, tag = 'input window, operand 0, single buffered']
    #allocation3 [shape = 's32[1]{0}', space=sflag, size = 0x4, scoped, tag = 'scoped memory for tpu_custom_call.1']
    #allocation4 [shape = 's32[1]{0}', space=sflag, size = 0x4, scoped, tag = 'scoped memory for tpu_custom_call.1']
    #allocation5 [shape = 'u8[512]{0}', space=vmem, size = 0x400, scoped, tag = 'input window, operand 1, single buffered']
    #allocation6 [shape = 's32[1]{0}', space=sflag, size = 0x4, scoped, tag = 'scoped memory for tpu_custom_call.1']
    #allocation7 [shape = 'u8[65536]{0}', space=vmem, size = 0x10000, scoped, tag = 'output window, operand 0, single buffered']
    %7 = vsyncpa [#allocation3], 0
    %8 = vsyncpa [#allocation6], 0
    %9 = vsyncpa [#allocation4], 0
    // Predicated region
    $region2: #{tpu_custom_call.1} parent=1 // pred_check
      _
    $region3: #{tpu_custom_call.1} parent=1 // pred_check_branch
      %11 = sbr.rel (0) target = $region5
    $region4: #{tpu_custom_call.1} parent=1 // pred_region
      %13 = vsyncadd [#allocation3], 1984
      %s14 = sshll.u32 %s0, 4
      %s15 = int_to_ptr.hbm [resolvable:$true] %s14
      %s16 = sshll.u32 [#allocation2], 4
      %s17 = int_to_ptr.vmem [resolvable:$true] %s16
      %22 = dma.hbm_to_vmem [thread:$0]  %s15, 64, %s17, [#allocation3], 64, 64, 4
    $region5: #{tpu_custom_call.1} parent=1 // pred_fallthru
      _
    // Predicated region
    $region6: #{tpu_custom_call.1} parent=1 // pred_check
      _
    $region7: #{tpu_custom_call.1} parent=1 // pred_check_branch
      %24 = sbr.rel (0) target = $region9
    $region8: #{tpu_custom_call.1} parent=1 // pred_region
      %26 = vsyncadd [#allocation6], 0
      %s28 = sshll.u32 %s1, 4
      %s29 = int_to_ptr.hbm [resolvable:$true] %s28
      %s30 = sshll.u32 [#allocation5], 4
      %s31 = int_to_ptr.vmem [resolvable:$true] %s30
      %33 = dma.hbm_to_vmem [thread:$0]  %s29, 16, %s31, [#allocation6]
    $region9: #{tpu_custom_call.1} parent=1 // pred_fallthru
      _
    // Predicated region
    $region10: #{tpu_custom_call.1} parent=1 // pred_check
      _
    $region11: #{tpu_custom_call.1} parent=1 // pred_check_branch
      %35 = sbr.rel (0) target = $region13
    $region12: #{tpu_custom_call.1} parent=1 // pred_region
      %37 = dma.done [#allocation3], 2048
    $region13: #{tpu_custom_call.1} parent=1 // pred_fallthru
      _
    // Predicated region
    $region14: #{tpu_custom_call.1} parent=1 // pred_check
      _
    $region15: #{tpu_custom_call.1} parent=1 // pred_check_branch
      %39 = sbr.rel (0) target = $region17
    $region16: #{tpu_custom_call.1} parent=1 // pred_region
      %41 = dma.done [#allocation6], 16
    $region17: #{tpu_custom_call.1} parent=1 // pred_fallthru
      _
    %v42 = vld [vmem:[#allocation2] sm:$0xff]
    %v43 = vld [vmem:[#allocation2 + $0x8] sm:$0xff]
    %v44 = vld [vmem:[#allocation2 + $0x10] sm:$0xff]
    %v45 = vld [vmem:[#allocation2 + $0x18] sm:$0xff]
    %v46 = vld [vmem:[#allocation2 + $0x20] sm:$0xff]
    %v47 = vld [vmem:[#allocation2 + $0x28] sm:$0xff]
    %v48 = vld [vmem:[#allocation2 + $0x30] sm:$0xff]
    %v49 = vld [vmem:[#allocation2 + $0x38] sm:$0xff]
    %v50 = vld [vmem:[#allocation2 + $0x40] sm:$0xff]
    %v51 = vld [vmem:[#allocation2 + $0x48] sm:$0xff]
    %v52 = vld [vmem:[#allocation2 + $0x50] sm:$0xff]
    %v53 = vld [vmem:[#allocation2 + $0x58] sm:$0xff]
    %v54 = vld [vmem:[#allocation2 + $0x60] sm:$0xff]
    %v55 = vld [vmem:[#allocation2 + $0x68] sm:$0xff]
    %v56 = vld [vmem:[#allocation2 + $0x70] sm:$0xff]
    %v57 = vld [vmem:[#allocation2 + $0x78] sm:$0xff]
    %v58 = vld [vmem:[#allocation5] sm:$0x1]
    %v60 = vperm.slane %v58, 0
    %v62 = vsub.f32 %v42, %v60
    %v63 = vsub.f32 %v43, %v60
    %v64 = vsub.f32 %v44, %v60
    %v65 = vsub.f32 %v45, %v60
    %v66 = vsub.f32 %v46, %v60
    %v67 = vsub.f32 %v47, %v60
    %v68 = vsub.f32 %v48, %v60
    %v69 = vsub.f32 %v49, %v60
    %v70 = vsub.f32 %v50, %v60
    %v71 = vsub.f32 %v51, %v60
    %v72 = vsub.f32 %v52, %v60
    %v73 = vsub.f32 %v53, %v60
    %v74 = vsub.f32 %v54, %v60
    %v75 = vsub.f32 %v55, %v60
    %v76 = vsub.f32 %v56, %v60
    %v77 = vsub.f32 %v57, %v60
    %v78 = vand.u32 2147483647, %v62
    %v79 = vand.u32 2147483647, %v63
    %v80 = vand.u32 2147483647, %v64
    %v81 = vand.u32 2147483647, %v65
    %v82 = vand.u32 2147483647, %v66
    %v83 = vand.u32 2147483647, %v67
    %v84 = vand.u32 2147483647, %v68
    %v85 = vand.u32 2147483647, %v69
    %v86 = vand.u32 2147483647, %v70
    %v87 = vand.u32 2147483647, %v71
    %v88 = vand.u32 2147483647, %v72
    %v89 = vand.u32 2147483647, %v73
    %v90 = vand.u32 2147483647, %v74
    %v91 = vand.u32 2147483647, %v75
    %v92 = vand.u32 2147483647, %v76
    %v93 = vand.u32 2147483647, %v77
    %v94 = vlaneseq
    %v95 = vshrl.u32 %v94, 7
    %v96 = vadd.s32 %v95, 8
    %v97 = vadd.s32 %v95, 16
    %v98 = vadd.s32 %v95, 24
    %v99 = vadd.s32 %v95, 32
    %v100 = vadd.s32 %v95, 40
    %v101 = vadd.s32 %v95, 48
    %v102 = vadd.s32 %v95, 56
    %v103 = vadd.s32 %v95, 64
    %v104 = vadd.s32 %v95, 72
    %v105 = vadd.s32 %v95, 80
    %v106 = vadd.s32 %v95, 88
    %v107 = vadd.s32 %v95, 96
    %v108 = vadd.s32 %v95, 104
    %v109 = vadd.s32 %v95, 112
    %v110 = vadd.s32 %v95, 120
    %v111 = vlaneseq
    %v112 = vand.u32 %v111, 127
    %v113 = vmul.u32 %v112, 32
    %v114 = vsub.s32 %v95, %v113
    %v115 = vsub.s32 %v96, %v113
    %v116 = vsub.s32 %v97, %v113
    %v117 = vsub.s32 %v98, %v113
    %v118 = vsub.s32 %v99, %v113
    %v119 = vsub.s32 %v100, %v113
    %v120 = vsub.s32 %v101, %v113
    %v121 = vsub.s32 %v102, %v113
    %v122 = vsub.s32 %v103, %v113
    %v123 = vsub.s32 %v104, %v113
    %v124 = vsub.s32 %v105, %v113
    %v125 = vsub.s32 %v106, %v113
    %v126 = vsub.s32 %v107, %v113
    %v127 = vsub.s32 %v108, %v113
    %v128 = vsub.s32 %v109, %v113
    %v129 = vsub.s32 %v110, %v113
    %vm130 = vcmp.ge.s32.totalorder %v114, 0
    %vm131 = vcmp.ge.s32.totalorder %v115, 0
    %vm132 = vcmp.ge.s32.totalorder %v116, 0
    %vm133 = vcmp.ge.s32.totalorder %v117, 0
    %vm134 = vcmp.ge.s32.totalorder %v118, 0
    %vm135 = vcmp.ge.s32.totalorder %v119, 0
    %vm136 = vcmp.ge.s32.totalorder %v120, 0
    %vm137 = vcmp.ge.s32.totalorder %v121, 0
    %vm138 = vcmp.ge.s32.totalorder %v122, 0
    %vm139 = vcmp.ge.s32.totalorder %v123, 0
    %vm140 = vcmp.ge.s32.totalorder %v124, 0
    %vm141 = vcmp.ge.s32.totalorder %v125, 0
    %vm142 = vcmp.ge.s32.totalorder %v126, 0
    %vm143 = vcmp.ge.s32.totalorder %v127, 0
    %vm144 = vcmp.ge.s32.totalorder %v128, 0
    %vm145 = vcmp.ge.s32.totalorder %v129, 0
    %vm146 = vcmp.lt.s32.totalorder %v114, 32
    %vm147 = vcmp.lt.s32.totalorder %v115, 32
    %vm148 = vcmp.lt.s32.totalorder %v116, 32
    %vm149 = vcmp.lt.s32.totalorder %v117, 32
    %vm150 = vcmp.lt.s32.totalorder %v118, 32
    %vm151 = vcmp.lt.s32.totalorder %v119, 32
    %vm152 = vcmp.lt.s32.totalorder %v120, 32
    %vm153 = vcmp.lt.s32.totalorder %v121, 32
    %vm154 = vcmp.lt.s32.totalorder %v122, 32
    %vm155 = vcmp.lt.s32.totalorder %v123, 32
    %vm156 = vcmp.lt.s32.totalorder %v124, 32
    %vm157 = vcmp.lt.s32.totalorder %v125, 32
    %vm158 = vcmp.lt.s32.totalorder %v126, 32
    %vm159 = vcmp.lt.s32.totalorder %v127, 32
    %vm160 = vcmp.lt.s32.totalorder %v128, 32
    %vm161 = vcmp.lt.s32.totalorder %v129, 32
    %vm162 = vmand %vm130, %vm146
    %vm163 = vmand %vm131, %vm147
    %vm164 = vmand %vm132, %vm148
    %vm165 = vmand %vm133, %vm149
    %vm166 = vmand %vm134, %vm150
    %vm167 = vmand %vm135, %vm151
    %vm168 = vmand %vm136, %vm152
    %vm169 = vmand %vm137, %vm153
    %vm170 = vmand %vm138, %vm154
    %vm171 = vmand %vm139, %vm155
    %vm172 = vmand %vm140, %vm156
    %vm173 = vmand %vm141, %vm157
    %vm174 = vmand %vm142, %vm158
    %vm175 = vmand %vm143, %vm159
    %vm176 = vmand %vm144, %vm160
    %vm177 = vmand %vm145, %vm161
    %v178 = vsel %vm162, 1.0, 0.0
    %v179 = vsel %vm163, 1.0, 0.0
    %v180 = vsel %vm164, 1.0, 0.0
    %v181 = vsel %vm165, 1.0, 0.0
    %v182 = vsel %vm166, 1.0, 0.0
    %v183 = vsel %vm167, 1.0, 0.0
    %v184 = vsel %vm168, 1.0, 0.0
    %v185 = vsel %vm169, 1.0, 0.0
    %v186 = vsel %vm170, 1.0, 0.0
    %v187 = vsel %vm171, 1.0, 0.0
    %v188 = vsel %vm172, 1.0, 0.0
    %v189 = vsel %vm173, 1.0, 0.0
    %v190 = vsel %vm174, 1.0, 0.0
    %v191 = vsel %vm175, 1.0, 0.0
    %v192 = vsel %vm176, 1.0, 0.0
    %v193 = vsel %vm177, 1.0, 0.0
    %v194 = vpack.c.bf16 %v179, %v178
    %v195 = vpack.c.bf16 %v181, %v180
    %v196 = vpack.c.bf16 %v183, %v182
    %v197 = vpack.c.bf16 %v185, %v184
    %v198 = vpack.c.bf16 %v187, %v186
    %v199 = vpack.c.bf16 %v189, %v188
    %v200 = vpack.c.bf16 %v191, %v190
    %v201 = vpack.c.bf16 %v193, %v192
    %v202 = vpack.c.bf16 %v78, %v78
    %v203 = vpack.c.bf16 %v79, %v79
    %v204 = vpack.c.bf16 %v80, %v80
    %v205 = vpack.c.bf16 %v81, %v81
    %v206 = vpack.c.bf16 %v82, %v82
    %v207 = vpack.c.bf16 %v83, %v83
    %v208 = vpack.c.bf16 %v84, %v84
    %v209 = vpack.c.bf16 %v85, %v85
    %v210 = vpack.c.bf16 %v86, %v86
    %v211 = vpack.c.bf16 %v87, %v87
    %v212 = vpack.c.bf16 %v88, %v88
    %v213 = vpack.c.bf16 %v89, %v89
    %v214 = vpack.c.bf16 %v90, %v90
    %v215 = vpack.c.bf16 %v91, %v91
    %v216 = vpack.c.bf16 %v92, %v92
    %v217 = vpack.c.bf16 %v93, %v93
    %v218 = vunpack.c.l.bf16 %v202
    %v219 = vunpack.c.l.bf16 %v203
    %v220 = vunpack.c.l.bf16 %v204
    %v221 = vunpack.c.l.bf16 %v205
    %v222 = vunpack.c.l.bf16 %v206
    %v223 = vunpack.c.l.bf16 %v207
    %v224 = vunpack.c.l.bf16 %v208
    %v225 = vunpack.c.l.bf16 %v209
    %v226 = vunpack.c.l.bf16 %v210
    %v227 = vunpack.c.l.bf16 %v211
    %v228 = vunpack.c.l.bf16 %v212
    %v229 = vunpack.c.l.bf16 %v213
    %v230 = vunpack.c.l.bf16 %v214
    %v231 = vunpack.c.l.bf16 %v215
    %v232 = vunpack.c.l.bf16 %v216
    %v233 = vunpack.c.l.bf16 %v217
    %v234 = vsub.f32 %v78, %v218
    %v235 = vsub.f32 %v79, %v219
    %v236 = vsub.f32 %v80, %v220
    %v237 = vsub.f32 %v81, %v221
    %v238 = vsub.f32 %v82, %v222
    %v239 = vsub.f32 %v83, %v223
    %v240 = vsub.f32 %v84, %v224
    %v241 = vsub.f32 %v85, %v225
    %v242 = vsub.f32 %v86, %v226
    %v243 = vsub.f32 %v87, %v227
    %v244 = vsub.f32 %v88, %v228
    %v245 = vsub.f32 %v89, %v229
    %v246 = vsub.f32 %v90, %v230
    %v247 = vsub.f32 %v91, %v231
    %v248 = vsub.f32 %v92, %v232
    %v249 = vsub.f32 %v93, %v233
    %v250 = vpack.c.bf16 %v235, %v234
    %v251 = vpack.c.bf16 %v237, %v236
    %v252 = vpack.c.bf16 %v239, %v238
    %v253 = vpack.c.bf16 %v241, %v240
    %v254 = vpack.c.bf16 %v243, %v242
    %v255 = vpack.c.bf16 %v245, %v244
    %v256 = vpack.c.bf16 %v247, %v246
    %v257 = vpack.c.bf16 %v249, %v248
    %258 = vmatpush.bf16.msra.mxu0 %v201
    %259 = vmatpush.bf16.msra.mxu0 %v200
    %260 = vmatpush.bf16.msra.mxu0 %v199
    %261 = vmatpush.bf16.msra.mxu0 %v198
    %262 = vmatpush.bf16.msra.mxu0 %v197
    %263 = vmatpush.bf16.msra.mxu0 %v196
    %264 = vmatpush.bf16.msra.mxu0 %v195
    %265 = vmatpush.bf16.msra.mxu0 %v194
    %266 = vmatmul.bf16.gmra.mxu0 %v250
    %v267 = vpop.f32.mrf.mxu0
    %v268 = vadd.f32 0.0, %v267
    %v269 = vpop.f32.mrf.mxu0
    %v270 = vadd.f32 0.0, %v269
    %271 = vmatmul.bf16.gmra.mxu0 %v251
    %v272 = vpop.f32.mrf.mxu0
    %v273 = vadd.f32 0.0, %v272
    %v274 = vpop.f32.mrf.mxu0
    %v275 = vadd.f32 0.0, %v274
    %276 = vmatmul.bf16.gmra.mxu0 %v252
    %v277 = vpop.f32.mrf.mxu0
    %v278 = vadd.f32 0.0, %v277
    %v279 = vpop.f32.mrf.mxu0
    %v280 = vadd.f32 0.0, %v279
    %281 = vmatmul.bf16.gmra.mxu0 %v253
    %v282 = vpop.f32.mrf.mxu0
    %v283 = vadd.f32 0.0, %v282
    %v284 = vpop.f32.mrf.mxu0
    %v285 = vadd.f32 0.0, %v284
    %286 = vmatmul.bf16.gmra.mxu0 %v254
    %v287 = vpop.f32.mrf.mxu0
    %v288 = vadd.f32 0.0, %v287
    %v289 = vpop.f32.mrf.mxu0
    %v290 = vadd.f32 0.0, %v289
    %291 = vmatmul.bf16.gmra.mxu0 %v255
    %v292 = vpop.f32.mrf.mxu0
    %v293 = vadd.f32 0.0, %v292
    %v294 = vpop.f32.mrf.mxu0
    %v295 = vadd.f32 0.0, %v294
    %296 = vmatmul.bf16.gmra.mxu0 %v256
    %v297 = vpop.f32.mrf.mxu0
    %v298 = vadd.f32 0.0, %v297
    %v299 = vpop.f32.mrf.mxu0
    %v300 = vadd.f32 0.0, %v299
    %301 = vmatmul.bf16.gmra.mxu0 %v257
    %v302 = vpop.f32.mrf.mxu0
    %v303 = vadd.f32 0.0, %v302
    %v304 = vpop.f32.mrf.mxu0
    %v305 = vadd.f32 0.0, %v304
    %306 = vdwg.mxu0
    %v323 = vunpack.c.l.b16 %v202
    %v324 = vunpack.c.l.b16 %v203
    %v325 = vunpack.c.l.b16 %v204
    %v326 = vunpack.c.l.b16 %v205
    %v327 = vunpack.c.l.b16 %v206
    %v328 = vunpack.c.l.b16 %v207
    %v329 = vunpack.c.l.b16 %v208
    %v330 = vunpack.c.l.b16 %v209
    %v331 = vunpack.c.l.b16 %v210
    %v332 = vunpack.c.l.b16 %v211
    %v333 = vunpack.c.l.b16 %v212
    %v334 = vunpack.c.l.b16 %v213
    %v335 = vunpack.c.l.b16 %v214
    %v336 = vunpack.c.l.b16 %v215
    %v337 = vunpack.c.l.b16 %v216
    %v338 = vunpack.c.l.b16 %v217
    %v339 = vpack.c.b16 %v324, %v323
    %v340 = vpack.c.b16 %v326, %v325
    %v341 = vpack.c.b16 %v328, %v327
    %v342 = vpack.c.b16 %v330, %v329
    %v343 = vpack.c.b16 %v332, %v331
    %v344 = vpack.c.b16 %v334, %v333
    %v345 = vpack.c.b16 %v336, %v335
    %v346 = vpack.c.b16 %v338, %v337
    %355 = vmatpush.bf16.msra.mxu0 %v201
    %356 = vmatpush.bf16.msra.mxu0 %v200
    %357 = vmatpush.bf16.msra.mxu0 %v199
    %358 = vmatpush.bf16.msra.mxu0 %v198
    %359 = vmatpush.bf16.msra.mxu0 %v197
    %360 = vmatpush.bf16.msra.mxu0 %v196
    %361 = vmatpush.bf16.msra.mxu0 %v195
    %362 = vmatpush.bf16.msra.mxu0 %v194
    %363 = vmatmul.bf16.gmra.mxu0 %v339
    %v364 = vpop.f32.mrf.mxu0
    %v365 = vadd.f32 %v268, %v364
    %v366 = vpop.f32.mrf.mxu0
    %v367 = vadd.f32 %v270, %v366
    %368 = vmatmul.bf16.gmra.mxu0 %v340
    %v369 = vpop.f32.mrf.mxu0
    %v370 = vadd.f32 %v273, %v369
    %v371 = vpop.f32.mrf.mxu0
    %v372 = vadd.f32 %v275, %v371
    %373 = vmatmul.bf16.gmra.mxu0 %v341
    %v374 = vpop.f32.mrf.mxu0
    %v375 = vadd.f32 %v278, %v374
    %v376 = vpop.f32.mrf.mxu0
    %v377 = vadd.f32 %v280, %v376
    %378 = vmatmul.bf16.gmra.mxu0 %v342
    %v379 = vpop.f32.mrf.mxu0
    %v380 = vadd.f32 %v283, %v379
    %v381 = vpop.f32.mrf.mxu0
    %v382 = vadd.f32 %v285, %v381
    %383 = vmatmul.bf16.gmra.mxu0 %v343
    %v384 = vpop.f32.mrf.mxu0
    %v385 = vadd.f32 %v288, %v384
    %v386 = vpop.f32.mrf.mxu0
    %v387 = vadd.f32 %v290, %v386
    %388 = vmatmul.bf16.gmra.mxu0 %v344
    %v389 = vpop.f32.mrf.mxu0
    %v390 = vadd.f32 %v293, %v389
    %v391 = vpop.f32.mrf.mxu0
    %v392 = vadd.f32 %v295, %v391
    %393 = vmatmul.bf16.gmra.mxu0 %v345
    %v394 = vpop.f32.mrf.mxu0
    %v395 = vadd.f32 %v298, %v394
    %v396 = vpop.f32.mrf.mxu0
    %v397 = vadd.f32 %v300, %v396
    %398 = vmatmul.bf16.gmra.mxu0 %v346
    %v399 = vpop.f32.mrf.mxu0
    %v400 = vadd.f32 %v303, %v399
    %v401 = vpop.f32.mrf.mxu0
    %v402 = vadd.f32 %v305, %v401
    %403 = vdwg.mxu0
    %vm404 = vcmask 31744
    %405 = vst.msk [vmem:[#allocation7] sm:$0xff] %vm404, %v365
    %406 = vst.msk [vmem:[#allocation7 + $0x8] sm:$0xff] %vm404, %v367
    %407 = vst.msk [vmem:[#allocation7 + $0x10] sm:$0xff] %vm404, %v370
    %408 = vst.msk [vmem:[#allocation7 + $0x18] sm:$0xff] %vm404, %v372
    %409 = vst.msk [vmem:[#allocation7 + $0x20] sm:$0xff] %vm404, %v375
    %410 = vst.msk [vmem:[#allocation7 + $0x28] sm:$0xff] %vm404, %v377
    %411 = vst.msk [vmem:[#allocation7 + $0x30] sm:$0xff] %vm404, %v380
    %412 = vst.msk [vmem:[#allocation7 + $0x38] sm:$0xff] %vm404, %v382
    %413 = vst.msk [vmem:[#allocation7 + $0x40] sm:$0xff] %vm404, %v385
    %414 = vst.msk [vmem:[#allocation7 + $0x48] sm:$0xff] %vm404, %v387
    %415 = vst.msk [vmem:[#allocation7 + $0x50] sm:$0xff] %vm404, %v390
    %416 = vst.msk [vmem:[#allocation7 + $0x58] sm:$0xff] %vm404, %v392
    %417 = vst.msk [vmem:[#allocation7 + $0x60] sm:$0xff] %vm404, %v395
    %418 = vst.msk [vmem:[#allocation7 + $0x68] sm:$0xff] %vm404, %v397
    %419 = vst.msk [vmem:[#allocation7 + $0x70] sm:$0xff] %vm404, %v400
    %420 = vst.msk [vmem:[#allocation7 + $0x78] sm:$0xff] %vm404, %v402
    // Predicated region
    $region18: #{tpu_custom_call.1} parent=1 // pred_check
      _
    $region19: #{tpu_custom_call.1} parent=1 // pred_check_branch
      %422 = sbr.rel (0) target = $region21
    $region20: #{tpu_custom_call.1} parent=1 // pred_region
      %424 = vsyncadd [#allocation4], 1984
      %s425 = sshll.u32 [#allocation7], 4
      %s426 = int_to_ptr.vmem [resolvable:$true] %s425
      %s427 = sshll.u32 %s2, 4
      %s428 = int_to_ptr.hbm [resolvable:$true] %s427
      %433 = dma.vmem_to_hbm [thread:$0]  %s426, 64, %s428, [#allocation4], 64, 64, 4
    $region21: #{tpu_custom_call.1} parent=1 // pred_fallthru
      _
    // Predicated region
    $region22: #{tpu_custom_call.1} parent=1 // pred_check
      _
    $region23: #{tpu_custom_call.1} parent=1 // pred_check_branch
      %435 = sbr.rel (0) target = $region25
    $region24: #{tpu_custom_call.1} parent=1 // pred_region
      %437 = dma.done [#allocation4], 2048
    $region25: #{tpu_custom_call.1} parent=1 // pred_fallthru
      _
    %438 = vsyncpa [#allocation3], 1
    %439 = vsyncpa [#allocation6], 1
    %440 = vsyncpa [#allocation4], 1

</llo_original>
